<compile_context>
chip_gen: v7x
topology: tpu7x:2x2x1
jax: 0.10.0
libtpu: 0.0.40
codegen_flags: <defaults>
</compile_context>

<pallas_src>
import math
from functools import partial

import jax
import jax.numpy as jnp
from jax import lax
from jax.experimental import pallas as pl
from jax.experimental.pallas import tpu as pltpu

_LANES = 128
_BLOCK_BYTES = 4 * 1024 * 1024   # per input, per pipeline buffer (DMA block)
_CHUNK_BYTES = 256 * 1024        # per input, per inner fori_loop chunk


def _cdiv(a: int, b: int) -> int:
    return -(-a // b)


def _round_up(x: int, m: int) -> int:
    return _cdiv(x, m) * m


def _lcm(a: int, b: int) -> int:
    return a * b // math.gcd(a, b)


def _sublane_multiple(dtype) -> int:
    # f32 -> 8, bf16 -> 16, int8/fp8 -> 32 (packed sublanes).
    return max(8, 32 // jnp.dtype(dtype).itemsize)


def _num_tensorcores() -> int:
    # v7x has 2 TensorCores per chip; v5e / v6e have 1.  Best-effort detection.
    try:
        dev = jax.devices()[0]
        if dev.platform != "tpu":
            return 1
        kind = str(getattr(dev, "device_kind", "")).lower()
        return 2 if "v7" in kind else 1
    except Exception:
        return 1


def _sumsq_kernel(o_ref, t_ref, out_ref, acc_ref, *,
                  chunk, n_chunks, steps_per_block, rows, mask_rows):
    """Accumulate per-(row-phase, lane) sums of (o - t)^2 over the inner axis.

    o_ref / t_ref : (chunk * n_chunks, W) input block (native dtype)
    out_ref       : (chunk, W) f32 per-parallel-block partial sums
    acc_ref       : (chunk, W) f32 VMEM accumulator (persists across steps)
    """
    step = pl.program_id(1)

    @pl.when(step == 0)
    def _init():
        acc_ref[...] = jnp.zeros_like(acc_ref)

    # First logical row covered by this grid step (global tile index * rows
    # per block).  Only used when the last tile is partial.
    base = (pl.program_id(0) * steps_per_block + step) * (chunk * n_chunks)

    def body(i, carry):
        off = i * chunk                       # chunk is a sublane-tile multiple
        o = o_ref[pl.ds(off, chunk), :].astype(jnp.float32)
        t = t_ref[pl.ds(off, chunk), :].astype(jnp.float32)
        d = o - t
        sq = d * d
        if mask_rows:
            rid = lax.broadcasted_iota(jnp.int32, sq.shape, 0) + (base + off)
            sq = jnp.where(rid < rows, sq, 0.0)   # zero garbage past-the-end rows
        acc_ref[...] += sq
        return carry

    lax.fori_loop(0, n_chunks, body, 0, unroll=True)

    @pl.when(step == pl.num_programs(1) - 1)
    def _emit():
        out_ref[...] = acc_ref[...]


def _phase_partial_sums(o2d, t2d, *, phase, block_rows=None, chunk_rows=None,
                        num_cores=None):
    """Stream (rows, W) slabs; return ((nblk*chunk, W) f32 partial sums, chunk).

    result[r, l] (per parallel block) = sum over rows j with j % chunk == r of
    (o2d[j, l] - t2d[j, l])^2.  `phase` is the row period of the channel
    pattern; chunk is forced to a multiple of it so every (r, l) cell of the
    result maps to exactly one channel.
    """
    rows, W = o2d.shape
    itemsize = jnp.dtype(o2d.dtype).itemsize
    w_pad = _round_up(W, _LANES)                  # lanes occupied in VMEM
    unit = _lcm(phase, _sublane_multiple(o2d.dtype))

    # Inner chunk (~256 KiB of VMEM-resident data per input).
    if chunk_rows is None:
        chunk_rows = _CHUNK_BYTES // (w_pad * itemsize)
    chunk = max(unit, (chunk_rows // unit) * unit)
    chunk = min(chunk, _round_up(rows, unit))

    # DMA block (~4 MiB per input per pipeline buffer), an exact multiple of
    # the chunk; never bigger than the whole problem.
    if block_rows is None:
        block_rows = _BLOCK_BYTES // (w_pad * itemsize)
    n_chunks = max(1, block_rows // chunk)
    n_chunks = min(n_chunks, _cdiv(rows, chunk))
    tr = chunk * n_chunks                         # rows per grid step

    tiles = _cdiv(rows, tr)
    if num_cores is None:
        num_cores = _num_tensorcores()
    # Split the sweep across TensorCores only when there are 2 of them and the
    # split is exact (avoids fully out-of-range tiles).  On single-TC chips
    # (v5e / v6e) the leading axis would only add init/finalize overhead.
    nblk = 2 if (num_cores >= 2 and tiles >= 2 and tiles % 2 == 0) else 1
    tpb = tiles // nblk
    mask_rows = (rows % tr) != 0                  # last tile is partial

    kernel = partial(_sumsq_kernel, chunk=chunk, n_chunks=n_chunks,
                     steps_per_block=tpb, rows=rows, mask_rows=mask_rows)

    # VMEM: 2 inputs x 2 pipeline buffers x (tr, w_pad) + acc/out + temporaries.
    est_vmem = 2 * 2 * tr * w_pad * itemsize + 4 * chunk * w_pad * 4 + (2 << 20)
    cp = dict(dimension_semantics=("parallel", "arbitrary"))
    # TODO(synk): on v7x, confirm the "parallel" leading axis engages both
    # TensorCores; if not, switch it to pltpu.CORE_PARALLEL.
    if est_vmem > 14 * 1024 * 1024:
        # v5e's scoped-VMEM default is only 16 MiB; raise it explicitly
        # (32 MiB is the v6e/v7x default and well under physical on all gens).
        cp["vmem_limit_bytes"] = 32 * 1024 * 1024

    cost = pl.CostEstimate(
        flops=3 * rows * W,
        transcendentals=0,
        bytes_accessed=2 * rows * W * itemsize + nblk * chunk * W * 4)

    in_spec = pl.BlockSpec((tr, W), lambda nb, t: (nb * tpb + t, 0))
    out_spec = pl.BlockSpec((chunk, W), lambda nb, t: (nb, 0))

    parts = pl.pallas_call(
        kernel,
        out_shape=jax.ShapeDtypeStruct((nblk * chunk, W), jnp.float32),
        grid_spec=pltpu.PrefetchScalarGridSpec(
            num_scalar_prefetch=0,
            grid=(nblk, tpb),
            in_specs=[in_spec, in_spec],
            out_specs=out_spec,
            scratch_shapes=[pltpu.VMEM((chunk, W), jnp.float32)]),
        compiler_params=pltpu.CompilerParams(**cp),
        cost_estimate=cost,
    )(o2d, t2d)
    return parts, chunk


def scaled_mse_loss(output, target, weights, *, block_rows=None, chunk_rows=None,
                    num_cores=None):
    """Pallas TPU forward of ScaledMSELoss:
         mean(mean((output - target)**2, axis=0) * weights)
       == sum_{b,c} weights[c] * (output[b,c] - target[b,c])^2 / (B*C).
    """
    B, C = output.shape
    assert target.shape == (B, C)
    w = jnp.asarray(weights, jnp.float32)
    assert w.shape == (C,), "weights must match the channel axis (axis 1)"
    N = B * C

    if N % _LANES == 0:
        # Lane-dense path: exact (no-pad) reshape to (N/128, 128) so every vreg
        # lane carries data.  Channel of cell (row, lane) is (row*128+lane)%C,
        # which is constant per (row % phase, lane).
        rows = N // _LANES
        o2d = output.reshape(rows, _LANES)
        t2d = target.reshape(rows, _LANES)
        phase = _lcm(C, _LANES) // _LANES
        stride = _LANES
    else:
        # Fallback: keep the natural (B, C) layout (channel == lane), no padded
        # copies; lane utilisation is C/128 but this only triggers when the
        # flat size is not 128-aligned.
        o2d, t2d = output, target
        phase = 1
        stride = C

    parts, chunk = _phase_partial_sums(
        o2d, t2d, phase=phase, block_rows=block_rows, chunk_rows=chunk_rows,
        num_cores=num_cores)

    # Tiny epilogue in plain JAX: per-channel weights + the single divide.
    W = parts.shape[-1]
    r = jnp.arange(chunk)[:, None]
    l = jnp.arange(W)[None, :]
    wmat = w[(r * stride + l) % C]                # (chunk, W) channel weights
    total = jnp.sum(parts.reshape(-1, chunk, W) * wmat)
    return total / jnp.float32(N)


if __name__ == "__main__":
    key = jax.random.PRNGKey(0)
    ks = jax.random.split(key, 10)

    def ref_loss(o, t, w):
        o32 = o.astype(jnp.float32)
        t32 = t.astype(jnp.float32)
        return jnp.mean(jnp.mean((o32 - t32) ** 2, axis=0) * w)

    def check(o, t, w, **kw):
        got = jax.block_until_ready(scaled_mse_loss(o, t, w, **kw))
        want = ref_loss(o, t, jnp.asarray(w, jnp.float32))
        assert jnp.allclose(got, want, rtol=1e-4, atol=1e-6), (got, want)

    w4 = jnp.array([1.0, 2.0, 0.5, 1.5], jnp.float32)

    # 1) Module-default sized problem (4 weighted channels, small batch):
    #    (B, C) fallback path, single block, no masking.
    o = jax.random.normal(ks[0], (8, 4), jnp.float32)
    t = jax.random.normal(ks[1], (8, 4), jnp.float32)
    check(o, t, w4)

    # 2) 128-aligned flat size -> lane-dense path, single tile.
    o = jax.random.normal(ks[2], (1024, 4), jnp.float32)
    t = jax.random.normal(ks[3], (1024, 4), jnp.float32)
    check(o, t, w4)

    # 3) Lane-dense, multi-tile accumulation + in-kernel masking of the partial
    #    last tile (rows=65, 16-row blocks of two 8-row chunks).
    o = jax.random.normal(ks[4], (2080, 4), jnp.float32)
    t = jax.random.normal(ks[5], (2080, 4), jnp.float32)
    check(o, t, w4, block_rows=16, chunk_rows=8)

    # 4) Channel count that does not divide 128, but 128-aligned flat size ->
    #    generalized lane-dense path (row-phase period 3).
    w6 = jnp.linspace(0.5, 2.0, 6).astype(jnp.float32)
    o = jax.random.normal(ks[6], (64, 6), jnp.float32)
    t = jax.random.normal(ks[7], (64, 6), jnp.float32)
    check(o, t, w6)

    # 5) Non-128-aligned flat size -> (B, C) fallback path with row masking.
    o = jax.random.normal(ks[8], (50, 6), jnp.float32)
    t = jax.random.normal(ks[9], (50, 6), jnp.float32)
    check(o, t, w6)

    # 6) bf16 inputs (half the HBM bytes moved; f32 in-register accumulation,
    #    16-row sublane rounding).
    o = jax.random.normal(ks[2], (512, 4), jnp.float32).astype(jnp.bfloat16)
    t = jax.random.normal(ks[3], (512, 4), jnp.float32).astype(jnp.bfloat16)
    check(o, t, w4)

    print("KERNEL_OK")
</pallas_src>

<mosaic_0001>
module attributes {stable_mosaic.version = 11 : i64} {
  func.func @_sumsq_kernel(%arg0: i32, %arg1: i32, %arg2: memref<8x4xf32, #tpu.memory_space<vmem>>, %arg3: memref<8x4xf32, #tpu.memory_space<vmem>>, %arg4: memref<8x4xf32, #tpu.memory_space<vmem>>, %arg5: memref<8x4xf32, #tpu.memory_space<vmem>>) attributes {dimension_semantics = [#tpu.dimension_semantics<parallel>, #tpu.dimension_semantics<arbitrary>], iteration_bounds = array<i64: 1, 1>, scalar_prefetch = 0 : i64, scratch_operands = 1 : i64, tpu.core_type = #tpu.core_type<tc>, window_params = [{transform_indices = @transform_0, window_bounds = array<i64: 8, 4>}, {transform_indices = @transform_1, window_bounds = array<i64: 8, 4>}, {transform_indices = @transform_2, window_bounds = array<i64: 8, 4>}]} {
    %c0_i32 = arith.constant 0 : i32
    %0 = arith.cmpi eq, %arg1, %c0_i32 : i32
    %1 = arith.extui %0 : i1 to i32
    %c0_i32_0 = arith.constant 0 : i32
    %2 = arith.cmpi ne, %1, %c0_i32_0 : i32
    scf.if %2 {
      %cst = arith.constant 0.000000e+00 : f32
      %16 = vector.broadcast %cst : f32 to vector<8x4xf32>
      %c0_9 = arith.constant 0 : index
      %c0_10 = arith.constant 0 : index
      %17 = vector.load %arg5[%c0_9, %c0_10] : memref<8x4xf32, #tpu.memory_space<vmem>>, vector<8x4xf32>
      tpu.vector_store %arg5[%c0_9, %c0_10], %16 {strides = array<i32>} : memref<8x4xf32, #tpu.memory_space<vmem>>, vector<8x4xf32>,
    } else {
    }
    %c0_i32_1 = arith.constant 0 : i32
    %c8_i32 = arith.constant 8 : i32
    %3 = arith.muli %c0_i32_1, %c8_i32 : i32
    %4 = arith.index_cast %3 : i32 to index
    %c0 = arith.constant 0 : index
    %5 = vector.load %arg2[%4, %c0] : memref<8x4xf32, #tpu.memory_space<vmem>>, vector<8x4xf32>
    %6 = arith.index_cast %3 : i32 to index
    %c0_2 = arith.constant 0 : index
    %7 = vector.load %arg3[%6, %c0_2] : memref<8x4xf32, #tpu.memory_space<vmem>>, vector<8x4xf32>
    %8 = arith.subf %5, %7 : vector<8x4xf32>
    %9 = arith.mulf %8, %8 : vector<8x4xf32>
    %c0_3 = arith.constant 0 : index
    %c0_4 = arith.constant 0 : index
    %10 = vector.load %arg5[%c0_3, %c0_4] : memref<8x4xf32, #tpu.memory_space<vmem>>, vector<8x4xf32>
    %11 = arith.addf %10, %9 : vector<8x4xf32>
    %c0_5 = arith.constant 0 : index
    %c0_6 = arith.constant 0 : index
    %12 = vector.load %arg5[%c0_5, %c0_6] : memref<8x4xf32, #tpu.memory_space<vmem>>, vector<8x4xf32>
    tpu.vector_store %arg5[%c0_5, %c0_6], %11 {strides = array<i32>} : memref<8x4xf32, #tpu.memory_space<vmem>>, vector<8x4xf32>,
    %c1_i32 = arith.constant 1 : i32
    %c0_i32_7 = arith.constant 0 : i32
    %13 = arith.cmpi eq, %arg1, %c0_i32_7 : i32
    %14 = arith.extui %13 : i1 to i32
    %c0_i32_8 = arith.constant 0 : i32
    %15 = arith.cmpi ne, %14, %c0_i32_8 : i32
    scf.if %15 {
      %c0_9 = arith.constant 0 : index
      %c0_10 = arith.constant 0 : index
      %16 = vector.load %arg5[%c0_9, %c0_10] : memref<8x4xf32, #tpu.memory_space<vmem>>, vector<8x4xf32>
      %c0_11 = arith.constant 0 : index
      %c0_12 = arith.constant 0 : index
      %17 = vector.load %arg4[%c0_11, %c0_12] : memref<8x4xf32, #tpu.memory_space<vmem>>, vector<8x4xf32>
      tpu.vector_store %arg4[%c0_11, %c0_12], %16 {strides = array<i32>} : memref<8x4xf32, #tpu.memory_space<vmem>>, vector<8x4xf32>,
    } else {
    }
    return
  }
  func.func @transform_0(%arg0: i32, %arg1: i32) -> (i32, i32) {
    %c1_i32 = arith.constant 1 : i32
    %0 = arith.muli %arg0, %c1_i32 : i32
    %1 = arith.addi %0, %arg1 : i32
    %c0_i32 = arith.constant 0 : i32
    %c0_i32_0 = arith.constant 0 : i32
    return %1, %c0_i32 : i32, i32
  }
  func.func @transform_1(%arg0: i32, %arg1: i32) -> (i32, i32) {
    %c1_i32 = arith.constant 1 : i32
    %0 = arith.muli %arg0, %c1_i32 : i32
    %1 = arith.addi %0, %arg1 : i32
    %c0_i32 = arith.constant 0 : i32
    %c0_i32_0 = arith.constant 0 : i32
    return %1, %c0_i32 : i32, i32
  }
  func.func @transform_2(%arg0: i32, %arg1: i32) -> (i32, i32) {
    %c0_i32 = arith.constant 0 : i32
    %c0_i32_0 = arith.constant 0 : i32
    return %arg0, %c0_i32 : i32, i32
  }
}

</mosaic_0001>

<llo_original>
// kernel: tpu_custom_call.1
$region0: #{tpu_custom_call.1}
  #allocation0 [shape = 'u32[]', space=smem, size = 0x4, offset = 0x4, fixed_abs, tag = 'smem constant byte address 0x4 - core index']
  #allocation1 [shape = 'u32[144,128]{1,0:T(1,128)}', space=vmem, size = 0x12000, scoped, tag = 'internal scratch']
  #allocation2 [shape = 'f32[8,4]{1,0:T(8,128)}', space=vmem, size = 0x1000, scoped, tag = 'scratch operand']
  %s0 = inlined_call_operand.vmem [shape: f32[8,4], index: 0, kind: input, shape index: {}]
  %s1 = inlined_call_operand.vmem [shape: f32[8,4], index: 1, kind: input, shape index: {}]
  %s2 = inlined_call_operand.vmem [shape: f32[8,4], index: 2, kind: output, shape index: {}]
  %s3 = sld [smem:[#allocation0]]
  $region26: #{tpu_custom_call.1} parent=0
    _
  %s5 = ssub.s32 1, %s3
  %s6 = scalar_select 0, %s5, %s3
  // Predicated region
  $region2: #{tpu_custom_call.1} parent=0 // pred_check
    _
  $region3: #{tpu_custom_call.1} parent=0 // pred_check_branch
    %8 = sbr.rel (0) target = $region5
  $region4: #{tpu_custom_call.1} parent=0 // pred_region
    %s9 = sadd.s32 0, 0
    %p10 = scmp.lt.s32.totalorder %s9, 0
    %s11 = scalar_select %p10, %s9, 0
    %s12 = smul.addr %s11, 8
    %s13 = scalar_lea.vmem %s0, %s12
    %s14 = sadd.s32 0, 0
  $region5: #{tpu_custom_call.1} parent=0 // pred_fallthru
    _
  // Predicated region
  $region6: #{tpu_custom_call.1} parent=0 // pred_check
    _
  $region7: #{tpu_custom_call.1} parent=0 // pred_check_branch
    %16 = sbr.rel (0) target = $region9
  $region8: #{tpu_custom_call.1} parent=0 // pred_region
    %s17 = sadd.s32 0, 0
    %p18 = scmp.lt.s32.totalorder %s17, 0
    %s19 = scalar_select %p18, %s17, 0
    %s20 = smul.addr %s19, 8
    %s21 = scalar_lea.vmem %s1, %s20
    %s22 = sadd.s32 0, 0
  $region9: #{tpu_custom_call.1} parent=0 // pred_fallthru
    _
  %s23 = sadd.s32 0, 0
  %p24 = scmp.lt.s32.totalorder %s23, 0
  %s25 = scalar_select %p24, %s23, 0
  %s26 = smul.addr %s25, 8
  %s27 = scalar_lea.vmem %s0, %s26
  %s28 = sadd.s32 0, 0
  %p29 = scmp.lt.s32.totalorder %s28, 0
  %s30 = scalar_select %p29, %s28, 0
  %s31 = smul.addr %s30, 8
  %s32 = scalar_lea.vmem %s1, %s31
  %s33 = sadd.s32 0, 0
  %p34 = scmp.lt.s32.totalorder %s33, 0
  %s35 = scalar_select %p34, %s33, 0
  %s36 = smul.addr %s35, 8
  %s37 = scalar_lea.vmem %s0, %s36
  %s38 = sadd.s32 0, 0
  %s39 = sadd.s32 0, 0
  %p40 = scmp.lt.s32.totalorder %s39, 0
  %s41 = scalar_select %p40, %s39, 0
  %s42 = smul.addr %s41, 8
  %s43 = scalar_lea.vmem %s1, %s42
  %s44 = sadd.s32 0, 0
  %p45 = scmp.eq.s32.totalorder 0, 0
  // Predicated region
  $region10: #{tpu_custom_call.1} parent=0 // pred_check
    %p46 = pneg %p45
  $region11: #{tpu_custom_call.1} parent=0 // pred_check_branch
    %48 = sbr.rel (%p46) target = $region13
  $region12: #{tpu_custom_call.1} parent=0 // pred_region
    %vm49 = vcmask 31744
    %50 = vst.msk [vmem:[#allocation2] sm:$0xff] %vm49, 0.0
  $region13: #{tpu_custom_call.1} parent=0 // pred_fallthru
    _
  %v51 = vld [vmem:[%s37] sm:$0xff]
  %v52 = vld [vmem:[%s43] sm:$0xff]
  %v53 = vsub.f32 %v51, %v52
  %v54 = vmul.f32 %v53, %v53
  %v55 = vld [vmem:[#allocation2] sm:$0xff]
  %v56 = vadd.f32 %v55, %v54
  %vm57 = vcmask 31744
  %58 = vst.msk [vmem:[#allocation2] sm:$0xff] %vm57, %v56
  // Predicated region
  $region14: #{tpu_custom_call.1} parent=0 // pred_check
    %p59 = pneg %p45
  $region15: #{tpu_custom_call.1} parent=0 // pred_check_branch
    %61 = sbr.rel (%p59) target = $region17
  $region16: #{tpu_custom_call.1} parent=0 // pred_region
    %v62 = vld [vmem:[#allocation2] sm:$0xff]
    %63 = vst.msk [vmem:[%s2] sm:$0xff] %vm57, %v62
  $region17: #{tpu_custom_call.1} parent=0 // pred_fallthru
    _
  // Predicated region
  $region18: #{tpu_custom_call.1} parent=0 // pred_check
    _
  $region19: #{tpu_custom_call.1} parent=0 // pred_check_branch
    %65 = sbr.rel (0) target = $region21
  $region20: #{tpu_custom_call.1} parent=0 // pred_region
    _
  $region21: #{tpu_custom_call.1} parent=0 // pred_fallthru
    _
  // Predicated region
  $region22: #{tpu_custom_call.1} parent=0 // pred_check
    _
  $region23: #{tpu_custom_call.1} parent=0 // pred_check_branch
    %67 = sbr.rel (0) target = $region25
  $region24: #{tpu_custom_call.1} parent=0 // pred_region
    _
  $region25: #{tpu_custom_call.1} parent=0 // pred_fallthru
    _

</llo_original>
